<compile_context>
chip_gen: v5e
topology: v5e:2x2
jax: 0.10.0
libtpu: 0.0.40
codegen_flags: <defaults>
</compile_context>

<pallas_src>
import jax
import jax.numpy as jnp
from jax.experimental import pallas as pl
from jax.experimental.pallas import tpu as pltpu

LANE = 128   # TPU vreg lane width
HID2 = 512   # out_features of the first Linear


def decoder_kernel(x_ref, w1_ref, b1_ref, w2_ref, b2_ref, o_ref):
    # ---- Linear(hidden_size, 512) + tanh -----------------------------------
    # x/w1 arrive as bf16 (native MXU input format); accumulate in f32.
    h = jnp.dot(x_ref[...], w1_ref[...], preferred_element_type=jnp.float32)
    # tanh kept in f32 so the same kernel is correct on v5e (no bf16 VPU/EUP).
    h = jnp.tanh(h + b1_ref[...])

    # ---- Linear(512, TILE_C) -------------------------------------------------
    logits = (
        jnp.dot(h.astype(jnp.bfloat16), w2_ref[...],
                preferred_element_type=jnp.float32)
        + b2_ref[...]
    )

    # ---- softmax over dim 0 (batch axis), matching F.softmax(..., dim=0) ----
    # Class columns are independent under a per-column softmax, so doing it
    # per class tile over the full batch is exact (this is why the grid is
    # over classes, not batch).
    m = jnp.max(logits, axis=0, keepdims=True)
    e = jnp.exp(logits - m)
    denom = jnp.sum(e, axis=0, keepdims=True)
    inv = pl.reciprocal(denom, approx=True)   # EUP vrcp (otherwise idle slot)
    inv = inv * (2.0 - denom * inv)           # one Newton step -> ~f32 accuracy
    o_ref[...] = (e * inv).astype(o_ref.dtype)  # lane-dense (128-wide) store


def decoder_forward(inp, w1, b1, w2p, b2p, n_class):
    """inp: (B, H) f32/bf16.  w1: (H, 512) bf16, b1: (1, 512) f32.
    w2p: (512, C_pad) bf16 and b2p: (1, C_pad) f32, ALREADY lane-padded
    (C_pad % 128 == 0) by init_params.  Returns (B, n_class) f32
    softmax-over-batch probabilities."""
    B, H = inp.shape
    C_pad = w2p.shape[1]
    # PyTorch applies .squeeze() before softmax(dim=0); with B > 1 and C > 1
    # squeeze is a no-op and dim 0 is the batch axis.  B == 1 would change the
    # normalization axis in the reference — guard it explicitly.
    assert B > 1, "B == 1 changes PyTorch squeeze()/softmax(dim=0) semantics"
    assert C_pad % LANE == 0 and n_class <= C_pad

    # Convert the activation to bf16 once, outside the kernel (halves input
    # DMA bytes into VMEM; removes the in-kernel pack).
    x_bf16 = inp.astype(jnp.bfloat16)

    tile_c = LANE                 # 128-wide class tiles map cleanly on all MXUs
    grid = (C_pad // tile_c,)     # class axis only: independent => "parallel"

    cost = pl.CostEstimate(
        flops=2 * B * (H * HID2 + HID2 * C_pad),
        # first-layer tanh is recomputed per class tile (cheap vs. re-DMA):
        transcendentals=(C_pad // tile_c) * B * HID2 + B * C_pad,
        bytes_accessed=int(x_bf16.nbytes + w1.nbytes + b1.nbytes
                           + w2p.nbytes + b2p.nbytes + B * C_pad * 4),
    )

    out_padded = pl.pallas_call(
        decoder_kernel,
        out_shape=jax.ShapeDtypeStruct((B, C_pad), jnp.float32),
        grid=grid,
        in_specs=[
            pl.BlockSpec((B, H), lambda j: (0, 0)),        # x   (resident)
            pl.BlockSpec((H, HID2), lambda j: (0, 0)),     # w1  (resident)
            pl.BlockSpec((1, HID2), lambda j: (0, 0)),     # b1  (resident)
            pl.BlockSpec((HID2, tile_c), lambda j: (0, j)),  # w2 class tile
            pl.BlockSpec((1, tile_c), lambda j: (0, j)),     # b2 class tile
        ],
        out_specs=pl.BlockSpec((B, tile_c), lambda j: (0, j)),
        compiler_params=pltpu.CompilerParams(
            # class tiles are fully independent -> megacore-shardable on v7x
            dimension_semantics=("parallel",),
        ),
        cost_estimate=cost,
    )(x_bf16, w1, b1, w2p, b2p)
    return out_padded[:, :n_class]


def init_params(key, hidden_size, n_class):
    """Deterministic synthetic params (shapes match the nn.Linear layers).
    Weights stored (in, out) — transposed vs. PyTorch — in bf16.  The second
    layer is padded to C_pad (multiple of 128) HERE, once, so the forward
    path never re-pads weights."""
    k1, k2, k3, k4 = jax.random.split(key, 4)
    w1 = (jax.random.normal(k1, (hidden_size, HID2), jnp.float32)
          * (1.0 / jnp.sqrt(hidden_size))).astype(jnp.bfloat16)
    b1 = jax.random.normal(k2, (1, HID2), jnp.float32) * 0.01

    c_pad = ((n_class + LANE - 1) // LANE) * LANE  # 128 multiple, never over-pad
    w2 = jnp.zeros((HID2, c_pad), jnp.float32).at[:, :n_class].set(
        jax.random.normal(k3, (HID2, n_class), jnp.float32)
        * (1.0 / jnp.sqrt(float(HID2))))
    b2 = jnp.zeros((1, c_pad), jnp.float32).at[:, :n_class].set(
        jax.random.normal(k4, (1, n_class), jnp.float32) * 0.01)
    return w1, b1, w2.astype(jnp.bfloat16), b2


if __name__ == "__main__":
    key = jax.random.PRNGKey(0)
    B, H, C = 8, 32, 16  # batch, hidden_size, n_class

    k_inp, k_par = jax.random.split(key)
    inp = jax.random.normal(k_inp, (B, H), jnp.float32)
    w1, b1, w2p, b2p = init_params(k_par, H, C)

    out = decoder_forward(inp, w1, b1, w2p, b2p, C)
    out = jax.block_until_ready(out)

    # Pure-JAX reference of the same math (bf16 MXU operands, f32 accumulate).
    w1f = w1.astype(jnp.float32)
    w2f = w2p.astype(jnp.float32)[:, :C]
    b2f = b2p[:, :C]
    xq = inp.astype(jnp.bfloat16).astype(jnp.float32)
    h_ref = jnp.tanh(xq @ w1f + b1)
    hq = h_ref.astype(jnp.bfloat16).astype(jnp.float32)
    logits_ref = hq @ w2f + b2f
    ref = jax.nn.softmax(jnp.squeeze(logits_ref), axis=0)

    assert out.shape == (B, C)
    assert jnp.allclose(jnp.sum(out, axis=0), 1.0, atol=1e-3)
    assert jnp.allclose(out, ref, atol=1e-2, rtol=1e-2)

    print("KERNEL_OK")
</pallas_src>

<mosaic_0001>
module attributes {stable_mosaic.version = 11 : i64} {
  func.func @decoder_kernel(%arg0: i32, %arg1: memref<8x32xbf16, #tpu.memory_space<vmem>>, %arg2: memref<32x512xbf16, #tpu.memory_space<vmem>>, %arg3: memref<1x512xf32, #tpu.memory_space<vmem>>, %arg4: memref<512x128xbf16, #tpu.memory_space<vmem>>, %arg5: memref<1x128xf32, #tpu.memory_space<vmem>>, %arg6: memref<8x128xf32, #tpu.memory_space<vmem>>) attributes {dimension_semantics = [#tpu.dimension_semantics<parallel>], iteration_bounds = array<i64: 1>, scalar_prefetch = 0 : i64, scratch_operands = 0 : i64, tpu.core_type = #tpu.core_type<tc>, window_params = [{pipeline_mode = #tpu.pipeline_mode<synchronous>, transform_indices = @transform_0, window_bounds = array<i64: 8, 32>}, {pipeline_mode = #tpu.pipeline_mode<synchronous>, transform_indices = @transform_1, window_bounds = array<i64: 32, 512>}, {pipeline_mode = #tpu.pipeline_mode<synchronous>, transform_indices = @transform_2, window_bounds = array<i64: 1, 512>}, {transform_indices = @transform_3, window_bounds = array<i64: 512, 128>}, {transform_indices = @transform_4, window_bounds = array<i64: 1, 128>}, {transform_indices = @transform_5, window_bounds = array<i64: 8, 128>}]} {
    %c0 = arith.constant 0 : index
    %c0_0 = arith.constant 0 : index
    %0 = vector.load %arg1[%c0, %c0_0] : memref<8x32xbf16, #tpu.memory_space<vmem>>, vector<8x32xbf16>
    %c0_1 = arith.constant 0 : index
    %c0_2 = arith.constant 0 : index
    %1 = vector.load %arg2[%c0_1, %c0_2] : memref<32x512xbf16, #tpu.memory_space<vmem>>, vector<32x512xbf16>
    %cst = arith.constant dense<0.000000e+00> : vector<8x512xf32>
    %2 = tpu.matmul %0, %1, %cst {dimension_numbers = #tpu.dot_dimension_numbers<[1], [0], [0], [1], [0, 0, 1, 1], [], []>} : vector<8x32xbf16>, vector<32x512xbf16>, vector<8x512xf32> -> vector<8x512xf32>
    %c0_3 = arith.constant 0 : index
    %c0_4 = arith.constant 0 : index
    %3 = vector.load %arg3[%c0_3, %c0_4] : memref<1x512xf32, #tpu.memory_space<vmem>>, vector<1x512xf32>
    %4 = vector.broadcast %3 : vector<1x512xf32> to vector<8x512xf32>
    %5 = arith.addf %2, %4 : vector<8x512xf32>
    %6 = math.tanh %5 : vector<8x512xf32>
    %7 = arith.truncf %6 : vector<8x512xf32> to vector<8x512xbf16>
    %c0_5 = arith.constant 0 : index
    %c0_6 = arith.constant 0 : index
    %8 = vector.load %arg4[%c0_5, %c0_6] : memref<512x128xbf16, #tpu.memory_space<vmem>>, vector<512x128xbf16>
    %cst_7 = arith.constant dense<0.000000e+00> : vector<8x128xf32>
    %9 = tpu.matmul %7, %8, %cst_7 {dimension_numbers = #tpu.dot_dimension_numbers<[1], [0], [0], [1], [0, 0, 1, 1], [], []>} : vector<8x512xbf16>, vector<512x128xbf16>, vector<8x128xf32> -> vector<8x128xf32>
    %c0_8 = arith.constant 0 : index
    %c0_9 = arith.constant 0 : index
    %10 = vector.load %arg5[%c0_8, %c0_9] : memref<1x128xf32, #tpu.memory_space<vmem>>, vector<1x128xf32>
    %11 = vector.broadcast %10 : vector<1x128xf32> to vector<8x128xf32>
    %12 = arith.addf %9, %11 : vector<8x128xf32>
    %cst_10 = arith.constant dense<0xFF800000> : vector<128xf32>
    %13 = vector.multi_reduction <maximumf>, %12, %cst_10 [0] : vector<8x128xf32> to vector<128xf32>
    %14 = vector.shape_cast %13 : vector<128xf32> to vector<1x128xf32>
    %15 = vector.broadcast %14 : vector<1x128xf32> to vector<8x128xf32>
    %16 = arith.subf %12, %15 : vector<8x128xf32>
    %17 = math.exp %16 : vector<8x128xf32>
    %cst_11 = arith.constant dense<0.000000e+00> : vector<128xf32>
    %18 = vector.multi_reduction <add>, %17, %cst_11 [0] : vector<8x128xf32> to vector<128xf32>
    %19 = vector.shape_cast %18 : vector<128xf32> to vector<1x128xf32>
    %20 = tpu.reciprocal %19 {approx = true} : vector<1x128xf32> -> vector<1x128xf32>
    %21 = arith.mulf %19, %20 : vector<1x128xf32>
    %cst_12 = arith.constant 2.000000e+00 : f32
    %22 = vector.broadcast %cst_12 : f32 to vector<1x128xf32>
    %23 = arith.subf %22, %21 : vector<1x128xf32>
    %24 = arith.mulf %20, %23 : vector<1x128xf32>
    %25 = vector.broadcast %24 : vector<1x128xf32> to vector<8x128xf32>
    %26 = arith.mulf %17, %25 : vector<8x128xf32>
    %c0_13 = arith.constant 0 : index
    %c0_14 = arith.constant 0 : index
    %27 = vector.load %arg6[%c0_13, %c0_14] : memref<8x128xf32, #tpu.memory_space<vmem>>, vector<8x128xf32>
    tpu.vector_store %arg6[%c0_13, %c0_14], %26 {strides = array<i32>} : memref<8x128xf32, #tpu.memory_space<vmem>>, vector<8x128xf32>,
    return
  }
  func.func @transform_0(%arg0: i32) -> (i32, i32) {
    %c0_i32 = arith.constant 0 : i32
    %c0_i32_0 = arith.constant 0 : i32
    %c0_i32_1 = arith.constant 0 : i32
    return %c0_i32, %c0_i32_0 : i32, i32
  }
  func.func @transform_1(%arg0: i32) -> (i32, i32) {
    %c0_i32 = arith.constant 0 : i32
    %c0_i32_0 = arith.constant 0 : i32
    %c0_i32_1 = arith.constant 0 : i32
    return %c0_i32, %c0_i32_0 : i32, i32
  }
  func.func @transform_2(%arg0: i32) -> (i32, i32) {
    %c0_i32 = arith.constant 0 : i32
    %c0_i32_0 = arith.constant 0 : i32
    %c0_i32_1 = arith.constant 0 : i32
    return %c0_i32, %c0_i32_0 : i32, i32
  }
  func.func @transform_3(%arg0: i32) -> (i32, i32) {
    %c0_i32 = arith.constant 0 : i32
    %c0_i32_0 = arith.constant 0 : i32
    return %c0_i32, %arg0 : i32, i32
  }
  func.func @transform_4(%arg0: i32) -> (i32, i32) {
    %c0_i32 = arith.constant 0 : i32
    %c0_i32_0 = arith.constant 0 : i32
    return %c0_i32, %arg0 : i32, i32
  }
  func.func @transform_5(%arg0: i32) -> (i32, i32) {
    %c0_i32 = arith.constant 0 : i32
    %c0_i32_0 = arith.constant 0 : i32
    return %c0_i32, %arg0 : i32, i32
  }
}

</mosaic_0001>

<llo_original>
// kernel: tpu_custom_call.1
$region0: #{tpu_custom_call.1}
  #allocation0 [shape = 'u32[]', space=smem, size = 0x4, offset = 0x4, fixed_abs, tag = 'smem constant byte address 0x4 - core index']
  #allocation1 [shape = 'u32[72,128]{1,0:T(1,128)}', space=vmem, size = 0x9000, scoped, tag = 'internal scratch']
  %s0 = inlined_call_operand.hbm [shape: bf16[8,32], index: 0, kind: input, shape index: {}]
  %s1 = inlined_call_operand.hbm [shape: bf16[32,512], index: 1, kind: input, shape index: {}]
  %s2 = inlined_call_operand.hbm [shape: f32[1,512], index: 2, kind: input, shape index: {}]
  %s3 = inlined_call_operand.hbm [shape: bf16[512,128], index: 3, kind: input, shape index: {}]
  %s4 = inlined_call_operand.vmem [shape: f32[1,128], index: 4, kind: input, shape index: {}]
  %s5 = inlined_call_operand.hbm [shape: f32[8,128], index: 5, kind: output, shape index: {}]
  %s6 = sld [smem:[#allocation0]]
  $region46: #{tpu_custom_call.1} parent=0
    _
  %s8 = ssub.s32 1, %s6
  %s9 = scalar_select 0, %s8, %s6
  $region1: #{tpu_custom_call.1} parent=0
    #allocation2 [shape = 'u8[2048]{0}', space=vmem, size = 0x800, scoped, tag = 'input window, operand 0, single buffered']
    #allocation3 [shape = 's32[1]{0}', space=sflag, size = 0x4, scoped, tag = 'scoped memory for tpu_custom_call.1']
    #allocation4 [shape = 's32[1]{0}', space=sflag, size = 0x4, scoped, tag = 'scoped memory for tpu_custom_call.1']
    #allocation5 [shape = 'u8[32768]{0}', space=vmem, size = 0x8000, scoped, tag = 'input window, operand 1, single buffered']
    #allocation6 [shape = 's32[1]{0}', space=sflag, size = 0x4, scoped, tag = 'scoped memory for tpu_custom_call.1']
    #allocation7 [shape = 'u8[2048]{0}', space=vmem, size = 0x800, scoped, tag = 'input window, operand 2, single buffered']
    #allocation8 [shape = 'u8[131072]{0}', space=vmem, size = 0x20000, scoped, tag = 'input window, operand 3, single buffered']
    #allocation9 [shape = 's32[1]{0}', space=sflag, size = 0x4, scoped, tag = 'scoped memory for tpu_custom_call.1']
    #allocation10 [shape = 'u8[4096]{0}', space=vmem, size = 0x1000, scoped, tag = 'output window, operand 0, single buffered']
    %10 = vsyncpa [#allocation3], 0
    %11 = vsyncpa [#allocation6], 0
    %12 = vsyncpa [#allocation9], 0
    %13 = vsyncpa [#allocation4], 0
    // Predicated region
    $region2: #{tpu_custom_call.1} parent=1 // pred_check
      _
    $region3: #{tpu_custom_call.1} parent=1 // pred_check_branch
      %15 = sbr.rel (0) target = $region5
    $region4: #{tpu_custom_call.1} parent=1 // pred_region
      %17 = vsyncadd [#allocation3], 0
      %s19 = sshll.u32 %s0, 4
      %s20 = int_to_ptr.hbm [resolvable:$true] %s19
      %s21 = sshll.u32 [#allocation2], 4
      %s22 = int_to_ptr.vmem [resolvable:$true] %s21
      %24 = dma.hbm_to_vmem [thread:$0]  %s20, 64, %s22, [#allocation3]
    $region5: #{tpu_custom_call.1} parent=1 // pred_fallthru
      _
    // Predicated region
    $region6: #{tpu_custom_call.1} parent=1 // pred_check
      _
    $region7: #{tpu_custom_call.1} parent=1 // pred_check_branch
      %26 = sbr.rel (0) target = $region9
    $region8: #{tpu_custom_call.1} parent=1 // pred_region
      %28 = vsyncadd [#allocation6], 0
      %s29 = sshll.u32 %s1, 4
      %s30 = int_to_ptr.hbm [resolvable:$true] %s29
      %s31 = sshll.u32 [#allocation5], 4
      %s32 = int_to_ptr.vmem [resolvable:$true] %s31
      %37 = dma.hbm_to_vmem [thread:$0]  %s30, 1024, %s32, [#allocation6], 256, 256, 16
    $region9: #{tpu_custom_call.1} parent=1 // pred_fallthru
      _
    // Predicated region
    $region10: #{tpu_custom_call.1} parent=1 // pred_check
      _
    $region11: #{tpu_custom_call.1} parent=1 // pred_check_branch
      %39 = sbr.rel (0) target = $region13
    $region12: #{tpu_custom_call.1} parent=1 // pred_region
      %41 = vsyncadd [#allocation6], 0
      %s43 = sshll.u32 %s2, 4
      %s44 = int_to_ptr.hbm [resolvable:$true] %s43
      %s45 = sshll.u32 [#allocation7], 4
      %s46 = int_to_ptr.vmem [resolvable:$true] %s45
      %48 = dma.hbm_to_vmem [thread:$0]  %s44, 64, %s46, [#allocation6]
    $region13: #{tpu_custom_call.1} parent=1 // pred_fallthru
      _
    // Predicated region
    $region14: #{tpu_custom_call.1} parent=1 // pred_check
      _
    $region15: #{tpu_custom_call.1} parent=1 // pred_check_branch
      %50 = sbr.rel (0) target = $region17
    $region16: #{tpu_custom_call.1} parent=1 // pred_region
      %52 = vsyncadd [#allocation9], 0
      %s53 = sshll.u32 %s3, 4
      %s54 = int_to_ptr.hbm [resolvable:$true] %s53
      %s55 = sshll.u32 [#allocation8], 4
      %s56 = int_to_ptr.vmem [resolvable:$true] %s55
      %61 = dma.hbm_to_vmem [thread:$0]  %s54, 4096, %s56, [#allocation9], 64, 64, 4
    $region17: #{tpu_custom_call.1} parent=1 // pred_fallthru
      _
    // Predicated region
    $region18: #{tpu_custom_call.1} parent=1 // pred_check
      _
    $region19: #{tpu_custom_call.1} parent=1 // pred_check_branch
      %63 = sbr.rel (0) target = $region21
    $region20: #{tpu_custom_call.1} parent=1 // pred_region
      _
    $region21: #{tpu_custom_call.1} parent=1 // pred_fallthru
      _
    // Predicated region
    $region22: #{tpu_custom_call.1} parent=1 // pred_check
      _
    $region23: #{tpu_custom_call.1} parent=1 // pred_check_branch
      %65 = sbr.rel (0) target = $region25
    $region24: #{tpu_custom_call.1} parent=1 // pred_region
      %67 = dma.done [#allocation3], 64
    $region25: #{tpu_custom_call.1} parent=1 // pred_fallthru
      _
    // Predicated region
    $region26: #{tpu_custom_call.1} parent=1 // pred_check
      _
    $region27: #{tpu_custom_call.1} parent=1 // pred_check_branch
      %69 = sbr.rel (0) target = $region29
    $region28: #{tpu_custom_call.1} parent=1 // pred_region
      %71 = dma.done [#allocation6], 1024
    $region29: #{tpu_custom_call.1} parent=1 // pred_fallthru
      _
    // Predicated region
    $region30: #{tpu_custom_call.1} parent=1 // pred_check
      _
    $region31: #{tpu_custom_call.1} parent=1 // pred_check_branch
      %73 = sbr.rel (0) target = $region33
    $region32: #{tpu_custom_call.1} parent=1 // pred_region
      %75 = dma.done [#allocation6], 64
    $region33: #{tpu_custom_call.1} parent=1 // pred_fallthru
      _
    // Predicated region
    $region34: #{tpu_custom_call.1} parent=1 // pred_check
      _
    $region35: #{tpu_custom_call.1} parent=1 // pred_check_branch
      %77 = sbr.rel (0) target = $region37
    $region36: #{tpu_custom_call.1} parent=1 // pred_region
      %79 = dma.done [#allocation9], 4096
    $region37: #{tpu_custom_call.1} parent=1 // pred_fallthru
      _
    %v81 = vld [vmem:[#allocation2] sm:$0xf]
    %v82 = vld [vmem:[#allocation5] sm:$0xff]
    %v83 = vld [vmem:[#allocation5 + $0x8] sm:$0xff]
    %v84 = vld [vmem:[#allocation5 + $0x10] sm:$0xff]
    %v85 = vld [vmem:[#allocation5 + $0x18] sm:$0xff]
    %v86 = vld [vmem:[#allocation5 + $0x20] sm:$0xff]
    %v87 = vld [vmem:[#allocation5 + $0x28] sm:$0xff]
    %v88 = vld [vmem:[#allocation5 + $0x30] sm:$0xff]
    %v89 = vld [vmem:[#allocation5 + $0x38] sm:$0xff]
    %v90 = vld [vmem:[#allocation7] sm:$0xf]
    %v92 = vperm.slane %v90, 0
    %v93 = vperm.slane %v90, 1
    %v94 = vperm.slane %v90, 2
    %v95 = vperm.slane %v90, 3
    %v108 = vunpack.c.l.b16 %v82
    %v109 = vunpack.c.h.b16 %v82
    %v110 = vunpack.c.l.b16 %v83
    %v111 = vunpack.c.h.b16 %v83
    %v112 = vunpack.c.l.b16 %v84
    %v113 = vunpack.c.h.b16 %v84
    %v114 = vunpack.c.l.b16 %v85
    %v115 = vunpack.c.h.b16 %v85
    %v116 = vunpack.c.l.b16 %v86
    %v117 = vunpack.c.h.b16 %v86
    %v118 = vunpack.c.l.b16 %v87
    %v119 = vunpack.c.h.b16 %v87
    %v120 = vunpack.c.l.b16 %v88
    %v121 = vunpack.c.h.b16 %v88
    %v122 = vunpack.c.l.b16 %v89
    %v123 = vunpack.c.h.b16 %v89
    %v124 = vpack.c.b16 %v112, %v108
    %v125 = vpack.c.b16 %v113, %v109
    %v126 = vpack.c.b16 %v114, %v110
    %v127 = vpack.c.b16 %v115, %v111
    %v128 = vpack.c.b16 %v120, %v116
    %v129 = vpack.c.b16 %v121, %v117
    %v130 = vpack.c.b16 %v122, %v118
    %v131 = vpack.c.b16 %v123, %v119
    %vm140 = vcmask 261120
    %v142 = vsel %vm140, %v81, 0
    %144 = vmatpush.bf16.msra.mxu0 0
    %145 = vmatpush.bf16.msra.mxu0 0
    %146 = vmatpush.bf16.msra.mxu0 0
    %147 = vmatpush.bf16.msra.mxu0 0
    %148 = vmatpush.bf16.msra.mxu0 0
    %149 = vmatpush.bf16.msra.mxu0 0
    %150 = vmatpush.bf16.msra.mxu0 %v128
    %151 = vmatpush.bf16.msra.mxu0 %v124
    %152 = vmatmul.bf16.gmra.mxu0 %v142
    %v153 = vpop.f32.mrf.mxu0
    %v154 = vadd.f32 %v92, %v153
    %v155 = vpop.f32.mrf.mxu0
    %156 = vdwg.mxu0
    %157 = vmatpush.bf16.msra.mxu0 0
    %158 = vmatpush.bf16.msra.mxu0 0
    %159 = vmatpush.bf16.msra.mxu0 0
    %160 = vmatpush.bf16.msra.mxu0 0
    %161 = vmatpush.bf16.msra.mxu0 0
    %162 = vmatpush.bf16.msra.mxu0 0
    %163 = vmatpush.bf16.msra.mxu0 %v129
    %164 = vmatpush.bf16.msra.mxu0 %v125
    %165 = vmatmul.bf16.gmra.mxu0 %v142
    %v166 = vpop.f32.mrf.mxu0
    %v167 = vadd.f32 %v93, %v166
    %v168 = vpop.f32.mrf.mxu0
    %169 = vdwg.mxu0
    %170 = vmatpush.bf16.msra.mxu0 0
    %171 = vmatpush.bf16.msra.mxu0 0
    %172 = vmatpush.bf16.msra.mxu0 0
    %173 = vmatpush.bf16.msra.mxu0 0
    %174 = vmatpush.bf16.msra.mxu0 0
    %175 = vmatpush.bf16.msra.mxu0 0
    %176 = vmatpush.bf16.msra.mxu0 %v130
    %177 = vmatpush.bf16.msra.mxu0 %v126
    %178 = vmatmul.bf16.gmra.mxu0 %v142
    %v179 = vpop.f32.mrf.mxu0
    %v180 = vadd.f32 %v94, %v179
    %v181 = vpop.f32.mrf.mxu0
    %182 = vdwg.mxu0
    %183 = vmatpush.bf16.msra.mxu0 0
    %184 = vmatpush.bf16.msra.mxu0 0
    %185 = vmatpush.bf16.msra.mxu0 0
    %186 = vmatpush.bf16.msra.mxu0 0
    %187 = vmatpush.bf16.msra.mxu0 0
    %188 = vmatpush.bf16.msra.mxu0 0
    %189 = vmatpush.bf16.msra.mxu0 %v131
    %190 = vmatpush.bf16.msra.mxu0 %v127
    %191 = vmatmul.bf16.gmra.mxu0 %v142
    %v192 = vpop.f32.mrf.mxu0
    %v193 = vadd.f32 %v95, %v192
    %v194 = vpop.f32.mrf.mxu0
    %195 = vdwg.mxu0
    %v196 = vtanh.pop %v154
    %v197 = vtanh.pop %v167
    %v198 = vtanh.pop %v180
    %v199 = vtanh.pop %v193
    %v200 = vpack.c.bf16 %v196, %v196
    %v201 = vpack.c.bf16 %v197, %v197
    %v202 = vpack.c.bf16 %v198, %v198
    %v203 = vpack.c.bf16 %v199, %v199
    %v204 = vld [vmem:[#allocation8] sm:$0xf]
    %v205 = vld [vmem:[#allocation8 + $0x4] sm:$0xf]
    %v206 = vld [vmem:[#allocation8 + $0x8] sm:$0xf]
    %v207 = vld [vmem:[#allocation8 + $0xc] sm:$0xf]
    %v208 = vld [vmem:[#allocation8 + $0x10] sm:$0xf]
    %v209 = vld [vmem:[#allocation8 + $0x14] sm:$0xf]
    %v210 = vld [vmem:[#allocation8 + $0x18] sm:$0xf]
    %v211 = vld [vmem:[#allocation8 + $0x1c] sm:$0xf]
    %v212 = vld [vmem:[#allocation8 + $0x20] sm:$0xf]
    %v213 = vld [vmem:[#allocation8 + $0x24] sm:$0xf]
    %v214 = vld [vmem:[#allocation8 + $0x28] sm:$0xf]
    %v215 = vld [vmem:[#allocation8 + $0x2c] sm:$0xf]
    %v216 = vld [vmem:[#allocation8 + $0x30] sm:$0xf]
    %v217 = vld [vmem:[#allocation8 + $0x34] sm:$0xf]
    %v218 = vld [vmem:[#allocation8 + $0x38] sm:$0xf]
    %v219 = vld [vmem:[#allocation8 + $0x3c] sm:$0xf]
    %v220 = vld [vmem:[#allocation8 + $0x40] sm:$0xf]
    %v221 = vld [vmem:[#allocation8 + $0x44] sm:$0xf]
    %v222 = vld [vmem:[#allocation8 + $0x48] sm:$0xf]
    %v223 = vld [vmem:[#allocation8 + $0x4c] sm:$0xf]
    %v224 = vld [vmem:[#allocation8 + $0x50] sm:$0xf]
    %v225 = vld [vmem:[#allocation8 + $0x54] sm:$0xf]
    %v226 = vld [vmem:[#allocation8 + $0x58] sm:$0xf]
    %v227 = vld [vmem:[#allocation8 + $0x5c] sm:$0xf]
    %v228 = vld [vmem:[#allocation8 + $0x60] sm:$0xf]
    %v229 = vld [vmem:[#allocation8 + $0x64] sm:$0xf]
    %v230 = vld [vmem:[#allocation8 + $0x68] sm:$0xf]
    %v231 = vld [vmem:[#allocation8 + $0x6c] sm:$0xf]
    %v232 = vld [vmem:[#allocation8 + $0x70] sm:$0xf]
    %v233 = vld [vmem:[#allocation8 + $0x74] sm:$0xf]
    %v234 = vld [vmem:[#allocation8 + $0x78] sm:$0xf]
    %v235 = vld [vmem:[#allocation8 + $0x7c] sm:$0xf]
    %v236 = vld [vmem:[#allocation8 + $0x80] sm:$0xf]
    %v237 = vld [vmem:[#allocation8 + $0x84] sm:$0xf]
    %v238 = vld [vmem:[#allocation8 + $0x88] sm:$0xf]
    %v239 = vld [vmem:[#allocation8 + $0x8c] sm:$0xf]
    %v240 = vld [vmem:[#allocation8 + $0x90] sm:$0xf]
    %v241 = vld [vmem:[#allocation8 + $0x94] sm:$0xf]
    %v242 = vld [vmem:[#allocation8 + $0x98] sm:$0xf]
    %v243 = vld [vmem:[#allocation8 + $0x9c] sm:$0xf]
    %v244 = vld [vmem:[#allocation8 + $0xa0] sm:$0xf]
    %v245 = vld [vmem:[#allocation8 + $0xa4] sm:$0xf]
    %v246 = vld [vmem:[#allocation8 + $0xa8] sm:$0xf]
    %v247 = vld [vmem:[#allocation8 + $0xac] sm:$0xf]
    %v248 = vld [vmem:[#allocation8 + $0xb0] sm:$0xf]
    %v249 = vld [vmem:[#allocation8 + $0xb4] sm:$0xf]
    %v250 = vld [vmem:[#allocation8 + $0xb8] sm:$0xf]
    %v251 = vld [vmem:[#allocation8 + $0xbc] sm:$0xf]
    %v252 = vld [vmem:[#allocation8 + $0xc0] sm:$0xf]
    %v253 = vld [vmem:[#allocation8 + $0xc4] sm:$0xf]
    %v254 = vld [vmem:[#allocation8 + $0xc8] sm:$0xf]
    %v255 = vld [vmem:[#allocation8 + $0xcc] sm:$0xf]
    %v256 = vld [vmem:[#allocation8 + $0xd0] sm:$0xf]
    %v257 = vld [vmem:[#allocation8 + $0xd4] sm:$0xf]
    %v258 = vld [vmem:[#allocation8 + $0xd8] sm:$0xf]
    %v259 = vld [vmem:[#allocation8 + $0xdc] sm:$0xf]
    %v260 = vld [vmem:[#allocation8 + $0xe0] sm:$0xf]
    %v261 = vld [vmem:[#allocation8 + $0xe4] sm:$0xf]
    %v262 = vld [vmem:[#allocation8 + $0xe8] sm:$0xf]
    %v263 = vld [vmem:[#allocation8 + $0xec] sm:$0xf]
    %v264 = vld [vmem:[#allocation8 + $0xf0] sm:$0xf]
    %v265 = vld [vmem:[#allocation8 + $0xf4] sm:$0xf]
    %v266 = vld [vmem:[#allocation8 + $0xf8] sm:$0xf]
    %v267 = vld [vmem:[#allocation8 + $0xfc] sm:$0xf]
    %v268 = vld [vmem:[%s4] sm:$0x1]
    %v270 = vperm.slane %v268, 0
    %v336 = vunpack.c.l.b16 %v204
    %v337 = vunpack.c.l.b16 %v205
    %v338 = vunpack.c.l.b16 %v206
    %v339 = vunpack.c.l.b16 %v207
    %v340 = vunpack.c.l.b16 %v208
    %v341 = vunpack.c.l.b16 %v209
    %v342 = vunpack.c.l.b16 %v210
    %v343 = vunpack.c.l.b16 %v211
    %v344 = vunpack.c.l.b16 %v212
    %v345 = vunpack.c.l.b16 %v213
    %v346 = vunpack.c.l.b16 %v214
    %v347 = vunpack.c.l.b16 %v215
    %v348 = vunpack.c.l.b16 %v216
    %v349 = vunpack.c.l.b16 %v217
    %v350 = vunpack.c.l.b16 %v218
    %v351 = vunpack.c.l.b16 %v219
    %v352 = vunpack.c.l.b16 %v220
    %v353 = vunpack.c.l.b16 %v221
    %v354 = vunpack.c.l.b16 %v222
    %v355 = vunpack.c.l.b16 %v223
    %v356 = vunpack.c.l.b16 %v224
    %v357 = vunpack.c.l.b16 %v225
    %v358 = vunpack.c.l.b16 %v226
    %v359 = vunpack.c.l.b16 %v227
    %v360 = vunpack.c.l.b16 %v228
    %v361 = vunpack.c.l.b16 %v229
    %v362 = vunpack.c.l.b16 %v230
    %v363 = vunpack.c.l.b16 %v231
    %v364 = vunpack.c.l.b16 %v232
    %v365 = vunpack.c.l.b16 %v233
    %v366 = vunpack.c.l.b16 %v234
    %v367 = vunpack.c.l.b16 %v235
    %v368 = vunpack.c.l.b16 %v236
    %v369 = vunpack.c.l.b16 %v237
    %v370 = vunpack.c.l.b16 %v238
    %v371 = vunpack.c.l.b16 %v239
    %v372 = vunpack.c.l.b16 %v240
    %v373 = vunpack.c.l.b16 %v241
    %v374 = vunpack.c.l.b16 %v242
    %v375 = vunpack.c.l.b16 %v243
    %v376 = vunpack.c.l.b16 %v244
    %v377 = vunpack.c.l.b16 %v245
    %v378 = vunpack.c.l.b16 %v246
    %v379 = vunpack.c.l.b16 %v247
    %v380 = vunpack.c.l.b16 %v248
    %v381 = vunpack.c.l.b16 %v249
    %v382 = vunpack.c.l.b16 %v250
    %v383 = vunpack.c.l.b16 %v251
    %v384 = vunpack.c.l.b16 %v252
    %v385 = vunpack.c.l.b16 %v253
    %v386 = vunpack.c.l.b16 %v254
    %v387 = vunpack.c.l.b16 %v255
    %v388 = vunpack.c.l.b16 %v256
    %v389 = vunpack.c.l.b16 %v257
    %v390 = vunpack.c.l.b16 %v258
    %v391 = vunpack.c.l.b16 %v259
    %v392 = vunpack.c.l.b16 %v260
    %v393 = vunpack.c.l.b16 %v261
    %v394 = vunpack.c.l.b16 %v262
    %v395 = vunpack.c.l.b16 %v263
    %v396 = vunpack.c.l.b16 %v264
    %v397 = vunpack.c.l.b16 %v265
    %v398 = vunpack.c.l.b16 %v266
    %v399 = vunpack.c.l.b16 %v267
    %v400 = vpack.c.b16 %v337, %v336
    %v401 = vpack.c.b16 %v339, %v338
    %v402 = vpack.c.b16 %v341, %v340
    %v403 = vpack.c.b16 %v343, %v342
    %v404 = vpack.c.b16 %v345, %v344
    %v405 = vpack.c.b16 %v347, %v346
    %v406 = vpack.c.b16 %v349, %v348
    %v407 = vpack.c.b16 %v351, %v350
    %v408 = vpack.c.b16 %v353, %v352
    %v409 = vpack.c.b16 %v355, %v354
    %v410 = vpack.c.b16 %v357, %v356
    %v411 = vpack.c.b16 %v359, %v358
    %v412 = vpack.c.b16 %v361, %v360
    %v413 = vpack.c.b16 %v363, %v362
    %v414 = vpack.c.b16 %v365, %v364
    %v415 = vpack.c.b16 %v367, %v366
    %v416 = vpack.c.b16 %v369, %v368
    %v417 = vpack.c.b16 %v371, %v370
    %v418 = vpack.c.b16 %v373, %v372
    %v419 = vpack.c.b16 %v375, %v374
    %v420 = vpack.c.b16 %v377, %v376
    %v421 = vpack.c.b16 %v379, %v378
    %v422 = vpack.c.b16 %v381, %v380
    %v423 = vpack.c.b16 %v383, %v382
    %v424 = vpack.c.b16 %v385, %v384
    %v425 = vpack.c.b16 %v387, %v386
    %v426 = vpack.c.b16 %v389, %v388
    %v427 = vpack.c.b16 %v391, %v390
    %v428 = vpack.c.b16 %v393, %v392
    %v429 = vpack.c.b16 %v395, %v394
    %v430 = vpack.c.b16 %v397, %v396
    %v431 = vpack.c.b16 %v399, %v398
    %464 = vmatpush.bf16.msra.mxu0 %v407
    %465 = vmatpush.bf16.msra.mxu0 %v406
    %466 = vmatpush.bf16.msra.mxu0 %v405
    %467 = vmatpush.bf16.msra.mxu0 %v404
    %468 = vmatpush.bf16.msra.mxu0 %v403
    %469 = vmatpush.bf16.msra.mxu0 %v402
    %470 = vmatpush.bf16.msra.mxu0 %v401
    %471 = vmatpush.bf16.msra.mxu0 %v400
    %472 = vmatmul.bf16.gmra.mxu0 %v200
    %v473 = vpop.f32.mrf.mxu0
    %v474 = vadd.f32 %v270, %v473
    %v475 = vpop.f32.mrf.mxu0
    %476 = vdwg.mxu0
    %477 = vmatpush.bf16.msra.mxu0 %v415
    %478 = vmatpush.bf16.msra.mxu0 %v414
    %479 = vmatpush.bf16.msra.mxu0 %v413
    %480 = vmatpush.bf16.msra.mxu0 %v412
    %481 = vmatpush.bf16.msra.mxu0 %v411
    %482 = vmatpush.bf16.msra.mxu0 %v410
    %483 = vmatpush.bf16.msra.mxu0 %v409
    %484 = vmatpush.bf16.msra.mxu0 %v408
    %485 = vmatmul.bf16.gmra.mxu0 %v201
    %v486 = vpop.f32.mrf.mxu0
    %v487 = vadd.f32 %v474, %v486
    %v488 = vpop.f32.mrf.mxu0
    %489 = vdwg.mxu0
    %490 = vmatpush.bf16.msra.mxu0 %v423
    %491 = vmatpush.bf16.msra.mxu0 %v422
    %492 = vmatpush.bf16.msra.mxu0 %v421
    %493 = vmatpush.bf16.msra.mxu0 %v420
    %494 = vmatpush.bf16.msra.mxu0 %v419
    %495 = vmatpush.bf16.msra.mxu0 %v418
    %496 = vmatpush.bf16.msra.mxu0 %v417
    %497 = vmatpush.bf16.msra.mxu0 %v416
    %498 = vmatmul.bf16.gmra.mxu0 %v202
    %v499 = vpop.f32.mrf.mxu0
    %v500 = vadd.f32 %v487, %v499
    %v501 = vpop.f32.mrf.mxu0
    %502 = vdwg.mxu0
    %503 = vmatpush.bf16.msra.mxu0 %v431
    %504 = vmatpush.bf16.msra.mxu0 %v430
    %505 = vmatpush.bf16.msra.mxu0 %v429
    %506 = vmatpush.bf16.msra.mxu0 %v428
    %507 = vmatpush.bf16.msra.mxu0 %v427
    %508 = vmatpush.bf16.msra.mxu0 %v426
    %509 = vmatpush.bf16.msra.mxu0 %v425
    %510 = vmatpush.bf16.msra.mxu0 %v424
    %511 = vmatmul.bf16.gmra.mxu0 %v203
    %v512 = vpop.f32.mrf.mxu0
    %v513 = vadd.f32 %v500, %v512
    %v514 = vpop.f32.mrf.mxu0
    %515 = vdwg.mxu0
    %v516 = vrot.slane %v513, 4
    %v517 = vmax.f32 %v513, %v516
    %v518 = vrot.slane %v517, 2
    %v519 = vmax.f32 %v517, %v518
    %v520 = vrot.slane %v519, 1
    %v521 = vmax.f32 %v519, %v520
    %v522 = vsub.f32 %v513, %v521
    %v523 = vmul.f32 %v522, 1.442695
    %v524 = vpow.pop %v523
    %v525 = vrot.slane %v524, 4
    %v526 = vadd.f32 %v524, %v525
    %v527 = vrot.slane %v526, 2
    %v528 = vadd.f32 %v526, %v527
    %v529 = vrot.slane %v528, 1
    %v530 = vadd.f32 %v528, %v529
    %v531 = vrcp.pop %v530
    %v532 = vmul.f32 %v530, %v531
    %v533 = vsub.f32 2.0, %v532
    %v534 = vmul.f32 %v531, %v533
    %v535 = vmul.f32 %v524, %v534
    %536 = vst [vmem:[#allocation10] sm:$0xff] %v535
    // Predicated region
    $region38: #{tpu_custom_call.1} parent=1 // pred_check
      _
    $region39: #{tpu_custom_call.1} parent=1 // pred_check_branch
      %538 = sbr.rel (0) target = $region41
    $region40: #{tpu_custom_call.1} parent=1 // pred_region
      %540 = vsyncadd [#allocation4], 0
      %s542 = sshll.u32 [#allocation10], 4
      %s543 = int_to_ptr.vmem [resolvable:$true] %s542
      %s544 = sshll.u32 %s5, 4
      %s545 = int_to_ptr.hbm [resolvable:$true] %s544
      %547 = dma.vmem_to_hbm [thread:$0]  %s543, 128, %s545, [#allocation4]
    $region41: #{tpu_custom_call.1} parent=1 // pred_fallthru
      _
    // Predicated region
    $region42: #{tpu_custom_call.1} parent=1 // pred_check
      _
    $region43: #{tpu_custom_call.1} parent=1 // pred_check_branch
      %549 = sbr.rel (0) target = $region45
    $region44: #{tpu_custom_call.1} parent=1 // pred_region
      %551 = dma.done [#allocation4], 128
    $region45: #{tpu_custom_call.1} parent=1 // pred_fallthru
      _
    %552 = vsyncpa [#allocation3], 1
    %553 = vsyncpa [#allocation6], 1
    %554 = vsyncpa [#allocation9], 1
    %555 = vsyncpa [#allocation4], 1

</llo_original>
